<compile_context>
chip_gen: v6e
topology: v6e:2x2x1
jax: 0.10.0
libtpu: 0.0.40
codegen_flags: <defaults>
</compile_context>

<pallas_src>
import jax
import jax.numpy as jnp
from jax.experimental import pallas as pl
from jax.experimental.pallas import tpu as pltpu


def _eca_kernel(w_ref, x_ref, o_ref):
    # w_ref : SMEM (3,) float32          -- Conv1d weight taps (k_size = 3)
    # x_ref : VMEM (Bt, C, HW) x.dtype
    # o_ref : VMEM (Bt, C, HW) x.dtype
    x = x_ref[...]                                    # native dtype; no f32 tile copy
    hw = x.shape[-1]

    # --- AdaptiveAvgPool2d(1): spatial mean with f32 accumulation ---
    m = jnp.sum(x, axis=2, keepdims=True, dtype=jnp.float32) * (1.0 / hw)  # (Bt, C, 1)

    # --- Conv1d(1, 1, k=3, padding=1, bias=False) along the channel axis ---
    # out[c] = w0*m[c-1] + w1*m[c] + w2*m[c+1], zero-padded at the channel edges.
    # The pooled vector is HW-times smaller than the tile, so this epilogue is
    # negligible traffic and hides under the block DMA.
    z = jnp.zeros_like(m[:, :1, :])
    m_prev = jnp.concatenate([z, m[:, :-1, :]], axis=1)      # m[c-1]
    m_next = jnp.concatenate([m[:, 1:, :], z], axis=1)       # m[c+1]
    y = w_ref[0] * m_prev + w_ref[1] * m + w_ref[2] * m_next  # (Bt, C, 1) f32

    # --- sigmoid gate; rescale in the input dtype (bf16 stays bf16 on VALU) ---
    a = jax.nn.sigmoid(y).astype(x.dtype)             # (Bt, C, 1)
    o_ref[...] = x * a                                # broadcast over the HW lanes


def _chip_info():
    """Return (num_tensorcores, vmem_cap_bytes); conservative on detection failure."""
    kind = ""
    try:
        kind = jax.devices()[0].device_kind.lower()
    except Exception:
        pass
    if "v7" in kind:
        # v7x: 2 TensorCores/chip, 64 MiB physical VMEM -> keep >= 16 MiB headroom.
        return 2, 48 << 20
    if any(t in kind for t in ("v6", "v5e", "v5 lite", "v5lite")):
        # v5e / v6e: single TensorCore, 128 MiB physical VMEM.
        return 1, 112 << 20
    # Unknown (v4/v5p megacore, emulator, ...): assume 2 cores, modest VMEM cap.
    return 2, 48 << 20


def _pick_batch_tile(B, per_batch_bytes, num_tc, target_bytes=8 << 20):
    """Batch-fuse factor Bt: largest block <= ~8 MiB; on multi-TensorCore chips
    keep >= 2 grid steps and prefer an even step count so no core idles."""
    if B <= 1:
        return 1
    bt_fit = max(1, min(B, target_bytes // max(1, per_batch_bytes)))
    if num_tc <= 1:
        return bt_fit                        # single core: just maximize the block
    bt_cap = min(bt_fit, pl.cdiv(B, 2))      # keep >= 2 grid steps
    for bt in range(bt_cap, 0, -1):          # largest bt giving an even step count
        if pl.cdiv(B, bt) % 2 == 0:
            return bt
    return bt_cap


def eca_attention(x, conv_w):
    """ECA forward. x: (B, C, H, W) NCHW; conv_w: (1, 1, 3) Conv1d weight."""
    B, C, H, W = x.shape
    k = conv_w.shape[-1]
    assert k == 3, "this kernel implements the default k_size=3"
    w = conv_w.reshape(k).astype(jnp.float32)

    HW = H * W
    x_flat = x.reshape(B, C, HW)
    itemsize = x.dtype.itemsize

    num_tc, vmem_cap = _chip_info()
    per_batch_bytes = C * HW * itemsize
    bt = _pick_batch_tile(B, per_batch_bytes, num_tc)
    block_bytes = bt * per_batch_bytes
    grid = (pl.cdiv(B, bt),)

    # Double-buffered input + output ~= 4x the block bytes resident in VMEM,
    # plus headroom; floor at 32 MiB, cap per chip generation.
    vmem_limit = int(min(vmem_cap, max(32 << 20, 4 * block_bytes + (2 << 20))))

    # Pure-bandwidth kernel: 1 read + 1 write of x, plus a tiny per-channel epilogue.
    cost = pl.CostEstimate(
        flops=3 * B * C * HW + 6 * B * C,
        transcendentals=B * C,                         # sigmoid per (batch, channel)
        bytes_accessed=2 * B * C * HW * itemsize + B * C * 4,
    )

    out_flat = pl.pallas_call(
        _eca_kernel,
        out_shape=jax.ShapeDtypeStruct((B, C, HW), x.dtype),
        grid=grid,
        in_specs=[
            pl.BlockSpec(memory_space=pltpu.MemorySpace.SMEM),     # conv weight taps
            pl.BlockSpec((bt, C, HW), lambda b: (b, 0, 0)),        # x block
        ],
        out_specs=pl.BlockSpec((bt, C, HW), lambda b: (b, 0, 0)),
        compiler_params=pltpu.CompilerParams(
            dimension_semantics=("parallel",),
            vmem_limit_bytes=vmem_limit,
        ),
        cost_estimate=cost,
    )(w, x_flat)
    return out_flat.reshape(B, C, H, W)


def _eca_reference(x, conv_w):
    """Pure-JAX reference matching the PyTorch module exactly."""
    w = conv_w.reshape(-1).astype(jnp.float32)
    m = jnp.mean(x.astype(jnp.float32), axis=(2, 3))            # (B, C)
    mp = jnp.pad(m, ((0, 0), (1, 1)))                           # zero pad along C
    y = w[0] * mp[:, :-2] + w[1] * mp[:, 1:-1] + w[2] * mp[:, 2:]
    a = jax.nn.sigmoid(y)[:, :, None, None]
    return (x * a).astype(x.dtype)


if __name__ == "__main__":
    key = jax.random.PRNGKey(0)
    kx, kw = jax.random.split(key)

    # Small but representative ECA shape (channels on sublanes, HW=256 lanes).
    B, C, H, W = 2, 64, 16, 16
    x = jax.random.normal(kx, (B, C, H, W), dtype=jnp.float32)
    # Deterministic synthetic Conv1d(1, 1, 3, bias=False) weight.
    conv_w = jax.random.normal(kw, (1, 1, 3), dtype=jnp.float32) * (1.0 / 3.0) ** 0.5

    out = jax.block_until_ready(eca_attention(x, conv_w))
    ref = jax.block_until_ready(_eca_reference(x, conv_w))

    assert out.shape == x.shape and out.dtype == x.dtype
    assert jnp.allclose(out, ref, atol=1e-5, rtol=1e-5), "Pallas ECA mismatch vs reference"
    print("KERNEL_OK")
</pallas_src>

<mosaic_0001>
module attributes {stable_mosaic.version = 11 : i64} {
  func.func @_eca_kernel(%arg0: i32, %arg1: memref<3xf32, #tpu.memory_space<smem>>, %arg2: memref<1x64x256xf32, #tpu.memory_space<vmem>>, %arg3: memref<1x64x256xf32, #tpu.memory_space<vmem>>) attributes {dimension_semantics = [#tpu.dimension_semantics<parallel>], iteration_bounds = array<i64: 2>, scalar_prefetch = 0 : i64, scratch_operands = 0 : i64, tpu.core_type = #tpu.core_type<tc>, window_params = [{transform_indices = @transform_0, window_bounds = array<i64: 3>}, {transform_indices = @transform_1, window_bounds = array<i64: 1, 64, 256>}, {transform_indices = @transform_2, window_bounds = array<i64: 1, 64, 256>}]} {
    %c0 = arith.constant 0 : index
    %c0_0 = arith.constant 0 : index
    %c0_1 = arith.constant 0 : index
    %0 = vector.load %arg2[%c0, %c0_0, %c0_1] : memref<1x64x256xf32, #tpu.memory_space<vmem>>, vector<1x64x256xf32>
    %cst = arith.constant dense<0.000000e+00> : vector<1x64xf32>
    %1 = vector.multi_reduction <add>, %0, %cst [2] : vector<1x64x256xf32> to vector<1x64xf32>
    %2 = vector.shape_cast %1 : vector<1x64xf32> to vector<1x64x1xf32>
    %cst_2 = arith.constant 3.906250e-03 : f32
    %3 = vector.broadcast %cst_2 : f32 to vector<1x64x1xf32>
    %4 = arith.mulf %2, %3 : vector<1x64x1xf32>
    %cst_3 = arith.constant 0.000000e+00 : f32
    %5 = vector.broadcast %cst_3 : f32 to vector<1x1x1xf32>
    %6 = vector.extract_strided_slice %4 {offsets = [0, 0, 0], sizes = [1, 63, 1], strides = [1, 1, 1]} : vector<1x64x1xf32> to vector<1x63x1xf32>
    %7 = tpu.concatenate %5, %6 in 1 : vector<1x1x1xf32>, vector<1x63x1xf32> -> vector<1x64x1xf32>
    %8 = vector.extract_strided_slice %4 {offsets = [0, 1, 0], sizes = [1, 63, 1], strides = [1, 1, 1]} : vector<1x64x1xf32> to vector<1x63x1xf32>
    %9 = tpu.concatenate %8, %5 in 1 : vector<1x63x1xf32>, vector<1x1x1xf32> -> vector<1x64x1xf32>
    %c0_4 = arith.constant 0 : index
    %10 = memref.load %arg1[%c0_4] : memref<3xf32, #tpu.memory_space<smem>>
    %11 = vector.broadcast %10 : f32 to vector<1x64x1xf32>
    %12 = arith.mulf %11, %7 : vector<1x64x1xf32>
    %c1 = arith.constant 1 : index
    %13 = memref.load %arg1[%c1] : memref<3xf32, #tpu.memory_space<smem>>
    %14 = vector.broadcast %13 : f32 to vector<1x64x1xf32>
    %15 = arith.mulf %14, %4 : vector<1x64x1xf32>
    %16 = arith.addf %12, %15 : vector<1x64x1xf32>
    %c2 = arith.constant 2 : index
    %17 = memref.load %arg1[%c2] : memref<3xf32, #tpu.memory_space<smem>>
    %18 = vector.broadcast %17 : f32 to vector<1x64x1xf32>
    %19 = arith.mulf %18, %9 : vector<1x64x1xf32>
    %20 = arith.addf %16, %19 : vector<1x64x1xf32>
    %21 = arith.negf %20 : vector<1x64x1xf32>
    %22 = math.exp %21 : vector<1x64x1xf32>
    %cst_5 = arith.constant 1.000000e+00 : f32
    %23 = vector.broadcast %cst_5 : f32 to vector<1x64x1xf32>
    %24 = arith.addf %23, %22 : vector<1x64x1xf32>
    %25 = arith.divf %23, %24 : vector<1x64x1xf32>
    %26 = vector.broadcast %25 : vector<1x64x1xf32> to vector<1x64x256xf32>
    %27 = arith.mulf %0, %26 : vector<1x64x256xf32>
    %c0_6 = arith.constant 0 : index
    %c0_7 = arith.constant 0 : index
    %c0_8 = arith.constant 0 : index
    %28 = vector.load %arg3[%c0_6, %c0_7, %c0_8] : memref<1x64x256xf32, #tpu.memory_space<vmem>>, vector<1x64x256xf32>
    tpu.vector_store %arg3[%c0_6, %c0_7, %c0_8], %27 {strides = array<i32>} : memref<1x64x256xf32, #tpu.memory_space<vmem>>, vector<1x64x256xf32>,
    return
  }
  func.func @transform_0(%arg0: i32) -> i32 {
    %c0_i32 = arith.constant 0 : i32
    %c0_i32_0 = arith.constant 0 : i32
    return %c0_i32 : i32
  }
  func.func @transform_1(%arg0: i32) -> (i32, i32, i32) {
    %c0_i32 = arith.constant 0 : i32
    %c0_i32_0 = arith.constant 0 : i32
    %c0_i32_1 = arith.constant 0 : i32
    return %arg0, %c0_i32, %c0_i32_0 : i32, i32, i32
  }
  func.func @transform_2(%arg0: i32) -> (i32, i32, i32) {
    %c0_i32 = arith.constant 0 : i32
    %c0_i32_0 = arith.constant 0 : i32
    %c0_i32_1 = arith.constant 0 : i32
    return %arg0, %c0_i32, %c0_i32_0 : i32, i32, i32
  }
}

</mosaic_0001>

<llo_original>
// kernel: tpu_custom_call.1
$region0: #{tpu_custom_call.1}
  #allocation0 [shape = 'u32[]', space=smem, size = 0x4, offset = 0x4, fixed_abs, tag = 'smem constant byte address 0x4 - core index']
  #allocation1 [shape = 'u32[144,128]{1,0:T(1,128)}', space=vmem, size = 0x12000, scoped, tag = 'internal scratch']
  %s0 = inlined_call_operand.hbm [shape: f32[3], index: 0, kind: input, shape index: {}]
  %s1 = inlined_call_operand.hbm [shape: f32[2,64,256], index: 1, kind: input, shape index: {}]
  %s2 = inlined_call_operand.hbm [shape: f32[2,64,256], index: 2, kind: output, shape index: {}]
  %s3 = sld [smem:[#allocation0]]
  $region49: #{tpu_custom_call.1} parent=0
    _
  %s5 = ssub.s32 1, %s3
  %s6 = scalar_select 0, %s5, %s3
  $region1: #{tpu_custom_call.1} parent=0
    #allocation2 [shape = 'u8[512]{0}', space=smem, size = 0x200, scoped, tag = 'input window, operand 0, single buffered']
    #allocation3 [shape = 's32[2]{0}', space=sflag, size = 0x8, scoped, tag = 'scoped memory for tpu_custom_call.1']
    #allocation4 [shape = 's32[2]{0}', space=sflag, size = 0x8, scoped, tag = 'scoped memory for tpu_custom_call.1']
    #allocation5 [shape = 's32[2]{0}', space=sflag, size = 0x8, scoped, tag = 'scoped memory for tpu_custom_call.1']
    #allocation6 [shape = 'u8[131072]{0}', space=vmem, size = 0x20000, scoped, tag = 'input window, operand 1']
    #allocation7 [shape = 'u8[131072]{0}', space=vmem, size = 0x20000, scoped, tag = 'output window, operand 0']
    %7 = vsyncpa [#allocation5], 0
    %8 = vsyncpa [#allocation3], 0
    %s9 = scalar_lea.sflag [#allocation3], 1
    %10 = vsyncpa %s9, 0
    %11 = vsyncpa [#allocation4], 0
    %s12 = scalar_lea.sflag [#allocation4], 1
    %13 = vsyncpa %s12, 0
    loop: start=0, step=1, limit=4
    $region2: #{tpu_custom_call.1} parent=1 // loop_pre_header
      _
    $region3: #{tpu_custom_call.1} parent=1 // loop_header
      %s15 = sphi 0, %s19
      %p16 = scmp.ge.s32.totalorder %s15, 4
      %s23 = sphi 0, %s23
      %s25 = sphi 0, %s23
      %s26 = sphi 0, %s25
      %s40 = sphi 0, %s26
      %s46 = sphi 0, %s48
      %s49 = sphi 0, %s46
      %s50 = sphi 0, %s49
      %s66 = sphi 0, %s50
      %s72 = sphi 0, %s74
      %s75 = sphi 0, %s72
      %s76 = sphi 0, %s75
      %s92 = sphi 0, %s76
    $region4: #{tpu_custom_call.1} parent=1 // loop_header_branch
      %18 = sbr.rel (%p16) target = $region8
    $region5: #{tpu_custom_call.1} parent=1 // loop_body
      %s20 = ssub.s32 %s15, 1
      %s21 = ssub.s32 %s15, 2
      %s22 = sadd.s32 %s15, 1
      %s24 = sadd.s32 %s23, 1
      %p27 = scmp.eq.s32.totalorder %s15, 1
      %p28 = scmp.ne.s32.totalorder %s23, %s25
      %p29 = scmp.eq.s32.totalorder %s15, 0
      %p30 = por %p28, %p29
      %p31 = scmp.ne.s32.totalorder %s23, %s25
      %p32 = scmp.eq.s32.totalorder %s20, 1
      %p33 = por %p31, %p32
      %p34 = scmp.ne.s32.totalorder %s25, %s26
      %p35 = scmp.eq.s32.totalorder %s20, 0
      %p36 = por %p34, %p35
      %p37 = scmp.ne.s32.totalorder %s25, %s26
      %p38 = scmp.eq.s32.totalorder %s21, 1
      %p39 = por %p37, %p38
      %p41 = scmp.ne.s32.totalorder %s26, %s40
      %p42 = scmp.eq.s32.totalorder %s21, 0
      %p43 = por %p41, %p42
      %s44 = ssub.s32 %s15, %s22
      %p45 = scmp.eq.s32.totalorder %s44, 0
      %s47 = sadd.s32 %s46, 1
      %s48 = scalar_select %p45, %s46, %s47
      %p51 = pneg %p45
      %p52 = scmp.eq.s32.totalorder %s15, 1
      %p53 = por %p51, %p52
      %p54 = scmp.ne.s32.totalorder %s46, %s49
      %p55 = scmp.eq.s32.totalorder %s15, 0
      %p56 = por %p54, %p55
      %p57 = scmp.ne.s32.totalorder %s46, %s49
      %p58 = scmp.eq.s32.totalorder %s20, 1
      %p59 = por %p57, %p58
      %p60 = scmp.ne.s32.totalorder %s49, %s50
      %p61 = scmp.eq.s32.totalorder %s20, 0
      %p62 = por %p60, %p61
      %p63 = scmp.ne.s32.totalorder %s49, %s50
      %p64 = scmp.eq.s32.totalorder %s21, 1
      %p65 = por %p63, %p64
      %p67 = scmp.ne.s32.totalorder %s50, %s66
      %p68 = scmp.eq.s32.totalorder %s21, 0
      %p69 = por %p67, %p68
      %s70 = ssub.s32 %s15, %s22
      %p71 = scmp.eq.s32.totalorder %s70, 0
      %s73 = sadd.s32 %s72, 1
      %s74 = scalar_select %p71, %s72, %s73
      %p77 = pneg %p71
      %p78 = scmp.eq.s32.totalorder %s15, 1
      %p79 = por %p77, %p78
      %p80 = scmp.ne.s32.totalorder %s72, %s75
      %p81 = scmp.eq.s32.totalorder %s15, 0
      %p82 = por %p80, %p81
      %p83 = scmp.ne.s32.totalorder %s72, %s75
      %p84 = scmp.eq.s32.totalorder %s20, 1
      %p85 = por %p83, %p84
      %p86 = scmp.ne.s32.totalorder %s75, %s76
      %p87 = scmp.eq.s32.totalorder %s20, 0
      %p88 = por %p86, %p87
      %p89 = scmp.ne.s32.totalorder %s75, %s76
      %p90 = scmp.eq.s32.totalorder %s21, 1
      %p91 = por %p89, %p90
      %p93 = scmp.ne.s32.totalorder %s76, %s92
      %p94 = scmp.eq.s32.totalorder %s21, 0
      %p95 = por %p93, %p94
      %p96 = scmp.le.s32.totalorder 1, %s15
      %p97 = scmp.lt.s32.totalorder %s15, 3
      %p98 = pnand %p96, %p97
      %p99 = pneg %p98
      // Predicated region
      $region9: #{tpu_custom_call.1} parent=5 // pred_check
        _
      $region10: #{tpu_custom_call.1} parent=5 // pred_check_branch
        %101 = sbr.rel (%p98) target = $region12
      $region11: #{tpu_custom_call.1} parent=5 // pred_region
        %s102 = ssub.s32 %s15, 1
        // Predicated region
        $region13: #{tpu_custom_call.1} parent=11 // pred_check
          %p103 = pneg %p36
        $region14: #{tpu_custom_call.1} parent=11 // pred_check_branch
          %105 = sbr.rel (%p103) target = $region16
        $region15: #{tpu_custom_call.1} parent=11 // pred_region
          %s107 = ssub.s32 16, 16
          %108 = vsyncadd [#allocation5], %s107
          %111 = dma.hbm_to_smem %s0, 16, [#allocation2], [#allocation5]
        $region16: #{tpu_custom_call.1} parent=11 // pred_fallthru
          _
      $region12: #{tpu_custom_call.1} parent=5 // pred_fallthru
        _
      %p112 = scmp.lt.s32.totalorder %s15, 2
      // Predicated region
      $region17: #{tpu_custom_call.1} parent=5 // pred_check
        %p113 = pneg %p112
      $region18: #{tpu_custom_call.1} parent=5 // pred_check_branch
        %115 = sbr.rel (%p113) target = $region20
      $region19: #{tpu_custom_call.1} parent=5 // pred_region
        // Predicated region
        $region21: #{tpu_custom_call.1} parent=19 // pred_check
          %p116 = pneg %p56
        $region22: #{tpu_custom_call.1} parent=19 // pred_check_branch
          %118 = sbr.rel (%p116) target = $region24
        $region23: #{tpu_custom_call.1} parent=19 // pred_region
          %s119 = sand.u32 %s46, 1
          %s120 = scalar_lea.sflag [#allocation3], %s119
          %s121 = sand.u32 %s46, 1
          %s122 = smul.addr %s121, 128
          %s123 = scalar_lea.vmem [#allocation6], %s122
          %s125 = ssub.s32 2048, 2048
          %126 = vsyncadd %s120, %s125
          %s127 = smul.addr %s15, 16
          %s128 = smul.addr %s127, 128
          %s129 = scalar_lea.hbm %s1, %s128
          %s130 = sshll.u32 %s123, 4
          %s131 = int_to_ptr.vmem [resolvable:$true] %s130
          %136 = dma.hbm_to_vmem [thread:$0]  %s129, 2048, %s131, %s120, 256, 256, 16
        $region24: #{tpu_custom_call.1} parent=19 // pred_fallthru
          _
      $region20: #{tpu_custom_call.1} parent=5 // pred_fallthru
        _
      %p137 = scmp.le.s32.totalorder 1, %s15
      %p138 = scmp.lt.s32.totalorder %s15, 3
      %p139 = pnand %p137, %p138
      %p140 = pneg %p139
      // Predicated region
      $region25: #{tpu_custom_call.1} parent=5 // pred_check
        _
      $region26: #{tpu_custom_call.1} parent=5 // pred_check_branch
        %142 = sbr.rel (%p139) target = $region28
      $region27: #{tpu_custom_call.1} parent=5 // pred_region
        %s143 = ssub.s32 %s15, 1
        // Predicated region
        $region29: #{tpu_custom_call.1} parent=27 // pred_check
          %p144 = pneg %p36
        $region30: #{tpu_custom_call.1} parent=27 // pred_check_branch
          %146 = sbr.rel (%p144) target = $region32
        $region31: #{tpu_custom_call.1} parent=27 // pred_region
          %147 = dma.done [#allocation5], 16
        $region32: #{tpu_custom_call.1} parent=27 // pred_fallthru
          _
        %s148 = sand.u32 %s49, 1
        %s149 = scalar_lea.sflag [#allocation3], %s148
        %s150 = sand.u32 %s49, 1
        %s151 = smul.addr %s150, 128
        %s152 = scalar_lea.vmem [#allocation6], %s151
        // Predicated region
        $region33: #{tpu_custom_call.1} parent=27 // pred_check
          %p153 = pneg %p62
        $region34: #{tpu_custom_call.1} parent=27 // pred_check_branch
          %155 = sbr.rel (%p153) target = $region36
        $region35: #{tpu_custom_call.1} parent=27 // pred_region
          %156 = dma.done %s149, 2048
        $region36: #{tpu_custom_call.1} parent=27 // pred_fallthru
          _
        %157 = sfence
        %p158 = pneg %p36
        %p159 = pneg %p33
        %s160 = sand.u32 %s49, 1
        %s161 = scalar_lea.sflag [#allocation3], %s160
        %s162 = sand.u32 %s49, 1
        %s163 = smul.addr %s162, 128
        %s164 = scalar_lea.vmem [#allocation6], %s163
        %p165 = pneg %p62
        %p166 = pneg %p59
        %p167 = pneg %p88
        %p168 = pneg %p85
        %s169 = sand.u32 %s75, 1
        %s170 = scalar_lea.sflag [#allocation4], %s169
        %s171 = sand.u32 %s75, 1
        %s172 = smul.addr %s171, 128
        %s173 = scalar_lea.vmem [#allocation7], %s172
        %v174 = vld [vmem:[%s152] sm:$0xff]
        %v175 = vld [vmem:[%s152 + $0x8] sm:$0xff]
        %v176 = vld [vmem:[%s152 + $0x10] sm:$0xff]
        %v177 = vld [vmem:[%s152 + $0x18] sm:$0xff]
        %v178 = vld [vmem:[%s152 + $0x20] sm:$0xff]
        %v179 = vld [vmem:[%s152 + $0x28] sm:$0xff]
        %v180 = vld [vmem:[%s152 + $0x30] sm:$0xff]
        %v181 = vld [vmem:[%s152 + $0x38] sm:$0xff]
        %v182 = vld [vmem:[%s152 + $0x40] sm:$0xff]
        %v183 = vld [vmem:[%s152 + $0x48] sm:$0xff]
        %v184 = vld [vmem:[%s152 + $0x50] sm:$0xff]
        %v185 = vld [vmem:[%s152 + $0x58] sm:$0xff]
        %v186 = vld [vmem:[%s152 + $0x60] sm:$0xff]
        %v187 = vld [vmem:[%s152 + $0x68] sm:$0xff]
        %v188 = vld [vmem:[%s152 + $0x70] sm:$0xff]
        %v189 = vld [vmem:[%s152 + $0x78] sm:$0xff]
        %v190 = vadd.f32 %v174, %v175
        %191 = vadd.xlane.f32.xlu0 %v190
        %v192 = vpop.xlane.xlu0 %191
        %v193 = vadd.f32 %v176, %v177
        %194 = vadd.xlane.f32.xlu0 %v193
        %v195 = vpop.xlane.xlu0 %194
        %v196 = vadd.f32 %v178, %v179
        %197 = vadd.xlane.f32.xlu0 %v196
        %v198 = vpop.xlane.xlu0 %197
        %v199 = vadd.f32 %v180, %v181
        %200 = vadd.xlane.f32.xlu0 %v199
        %v201 = vpop.xlane.xlu0 %200
        %v202 = vadd.f32 %v182, %v183
        %203 = vadd.xlane.f32.xlu0 %v202
        %v204 = vpop.xlane.xlu0 %203
        %v205 = vadd.f32 %v184, %v185
        %206 = vadd.xlane.f32.xlu0 %v205
        %v207 = vpop.xlane.xlu0 %206
        %v208 = vadd.f32 %v186, %v187
        %209 = vadd.xlane.f32.xlu0 %v208
        %v210 = vpop.xlane.xlu0 %209
        %v211 = vadd.f32 %v188, %v189
        %212 = vadd.xlane.f32.xlu0 %v211
        %v213 = vpop.xlane.xlu0 %212
        %v214 = vmul.f32 %v192, 0.00390625
        %v215 = vmul.f32 %v195, 0.00390625
        %v216 = vmul.f32 %v198, 0.00390625
        %v217 = vmul.f32 %v201, 0.00390625
        %v218 = vmul.f32 %v204, 0.00390625
        %v219 = vmul.f32 %v207, 0.00390625
        %v220 = vmul.f32 %v210, 0.00390625
        %v221 = vmul.f32 %v213, 0.00390625
        %vm230 = vcmask 1040384
        %v231 = vrot.slane %v214, 7
        %v232 = vrot.slane %v215, 7
        %v233 = vsel %vm230, %v231, %v232
        %v234 = vrot.slane %v216, 7
        %v235 = vsel %vm230, %v232, %v234
        %v236 = vrot.slane %v217, 7
        %v237 = vsel %vm230, %v234, %v236
        %v238 = vrot.slane %v218, 7
        %v239 = vsel %vm230, %v236, %v238
        %v240 = vrot.slane %v219, 7
        %v241 = vsel %vm230, %v238, %v240
        %v242 = vrot.slane %v220, 7
        %v243 = vsel %vm230, %v240, %v242
        %v244 = vrot.slane %v221, 7
        %v245 = vsel %vm230, %v242, %v244
        %v254 = vsel %vm230, 0.0, %v231
        %vm255 = vcmask 1046528
        %v256 = vrot.slane %v214, 1
        %v257 = vrot.slane %v215, 1
        %v258 = vsel %vm255, %v256, %v257
        %v259 = vrot.slane %v216, 1
        %v260 = vsel %vm255, %v257, %v259
        %v261 = vrot.slane %v217, 1
        %v262 = vsel %vm255, %v259, %v261
        %v263 = vrot.slane %v218, 1
        %v264 = vsel %vm255, %v261, %v263
        %v265 = vrot.slane %v219, 1
        %v266 = vsel %vm255, %v263, %v265
        %v267 = vrot.slane %v220, 1
        %v268 = vsel %vm255, %v265, %v267
        %v269 = vrot.slane %v221, 1
        %v270 = vsel %vm255, %v267, %v269
        %v279 = vsel %vm255, %v269, 0.0
        %s280 = sld [smem:[#allocation2]]
        %v281 = vstv %s280
        %v282 = vmul.f32 %v281, %v254
        %v283 = vmul.f32 %v281, %v233
        %v284 = vmul.f32 %v281, %v235
        %v285 = vmul.f32 %v281, %v237
        %v286 = vmul.f32 %v281, %v239
        %v287 = vmul.f32 %v281, %v241
        %v288 = vmul.f32 %v281, %v243
        %v289 = vmul.f32 %v281, %v245
        %s290 = sld [smem:[#allocation2 + $0x1]]
        %v291 = vstv %s290
        %v292 = vmul.f32 %v291, %v214
        %v293 = vmul.f32 %v291, %v215
        %v294 = vmul.f32 %v291, %v216
        %v295 = vmul.f32 %v291, %v217
        %v296 = vmul.f32 %v291, %v218
        %v297 = vmul.f32 %v291, %v219
        %v298 = vmul.f32 %v291, %v220
        %v299 = vmul.f32 %v291, %v221
        %v300 = vadd.f32 %v282, %v292
        %v301 = vadd.f32 %v283, %v293
        %v302 = vadd.f32 %v284, %v294
        %v303 = vadd.f32 %v285, %v295
        %v304 = vadd.f32 %v286, %v296
        %v305 = vadd.f32 %v287, %v297
        %v306 = vadd.f32 %v288, %v298
        %v307 = vadd.f32 %v289, %v299
        %s308 = sld [smem:[#allocation2 + $0x2]]
        %v309 = vstv %s308
        %v310 = vmul.f32 %v309, %v258
        %v311 = vmul.f32 %v309, %v260
        %v312 = vmul.f32 %v309, %v262
        %v313 = vmul.f32 %v309, %v264
        %v314 = vmul.f32 %v309, %v266
        %v315 = vmul.f32 %v309, %v268
        %v316 = vmul.f32 %v309, %v270
        %v317 = vmul.f32 %v309, %v279
        %v318 = vadd.f32 %v300, %v310
        %v319 = vadd.f32 %v301, %v311
        %v320 = vadd.f32 %v302, %v312
        %v321 = vadd.f32 %v303, %v313
        %v322 = vadd.f32 %v304, %v314
        %v323 = vadd.f32 %v305, %v315
        %v324 = vadd.f32 %v306, %v316
        %v325 = vadd.f32 %v307, %v317
        %v326 = vxor.u32 %v318, 2147483648
        %v327 = vxor.u32 %v319, 2147483648
        %v328 = vxor.u32 %v320, 2147483648
        %v329 = vxor.u32 %v321, 2147483648
        %v330 = vxor.u32 %v322, 2147483648
        %v331 = vxor.u32 %v323, 2147483648
        %v332 = vxor.u32 %v324, 2147483648
        %v333 = vxor.u32 %v325, 2147483648
        %v334 = vmul.f32 %v326, 1.442695
        %v335 = vpow.pop %v334
        %v336 = vmul.f32 %v327, 1.442695
        %v337 = vpow.pop %v336
        %v338 = vmul.f32 %v328, 1.442695
        %v339 = vpow.pop %v338
        %v340 = vmul.f32 %v329, 1.442695
        %v341 = vpow.pop %v340
        %v342 = vmul.f32 %v330, 1.442695
        %v343 = vpow.pop %v342
        %v344 = vmul.f32 %v331, 1.442695
        %v345 = vpow.pop %v344
        %v346 = vmul.f32 %v332, 1.442695
        %v347 = vpow.pop %v346
        %v348 = vmul.f32 %v333, 1.442695
        %v349 = vpow.pop %v348
        %v350 = vadd.f32 %v335, 1.0
        %v351 = vadd.f32 %v337, 1.0
        %v352 = vadd.f32 %v339, 1.0
        %v353 = vadd.f32 %v341, 1.0
        %v354 = vadd.f32 %v343, 1.0
        %v355 = vadd.f32 %v345, 1.0
        %v356 = vadd.f32 %v347, 1.0
        %v357 = vadd.f32 %v349, 1.0
        %v358 = vrcp.pop %v350
        %v359 = vmul.f32 1.0, %v358
        %v360 = vrcp.pop %v351
        %v361 = vmul.f32 1.0, %v360
        %v362 = vrcp.pop %v352
        %v363 = vmul.f32 1.0, %v362
        %v364 = vrcp.pop %v353
        %v365 = vmul.f32 1.0, %v364
        %v366 = vrcp.pop %v354
        %v367 = vmul.f32 1.0, %v366
        %v368 = vrcp.pop %v355
        %v369 = vmul.f32 1.0, %v368
        %v370 = vrcp.pop %v356
        %v371 = vmul.f32 1.0, %v370
        %v372 = vrcp.pop %v357
        %v373 = vmul.f32 1.0, %v372
        %375 = vset.pattern.permute.xlu0 0
        %376 = vperm.xlu0 %375, %v359
        %v377 = vpop.permute.xlu0 %376
        %380 = vset.pattern.permute.xlu0 0
        %381 = vperm.xlu0 %380, %v361
        %v382 = vpop.permute.xlu0 %381
        %385 = vset.pattern.permute.xlu0 0
        %386 = vperm.xlu0 %385, %v363
        %v387 = vpop.permute.xlu0 %386
        %390 = vset.pattern.permute.xlu0 0
        %391 = vperm.xlu0 %390, %v365
        %v392 = vpop.permute.xlu0 %391
        %395 = vset.pattern.permute.xlu0 0
        %396 = vperm.xlu0 %395, %v367
        %v397 = vpop.permute.xlu0 %396
        %400 = vset.pattern.permute.xlu0 0
        %401 = vperm.xlu0 %400, %v369
        %v402 = vpop.permute.xlu0 %401
        %405 = vset.pattern.permute.xlu0 0
        %406 = vperm.xlu0 %405, %v371
        %v407 = vpop.permute.xlu0 %406
        %410 = vset.pattern.permute.xlu0 0
        %411 = vperm.xlu0 %410, %v373
        %v412 = vpop.permute.xlu0 %411
        %v414 = vmul.f32 %v174, %v377
        %v415 = vmul.f32 %v175, %v377
        %v416 = vmul.f32 %v176, %v382
        %v417 = vmul.f32 %v177, %v382
        %v418 = vmul.f32 %v178, %v387
        %v419 = vmul.f32 %v179, %v387
        %v420 = vmul.f32 %v180, %v392
        %v421 = vmul.f32 %v181, %v392
        %v422 = vmul.f32 %v182, %v397
        %v423 = vmul.f32 %v183, %v397
        %v424 = vmul.f32 %v184, %v402
        %v425 = vmul.f32 %v185, %v402
        %v426 = vmul.f32 %v186, %v407
        %v427 = vmul.f32 %v187, %v407
        %v428 = vmul.f32 %v188, %v412
        %v429 = vmul.f32 %v189, %v412
        %430 = vst [vmem:[%s173] sm:$0xff] %v414
        %431 = vst [vmem:[%s173 + $0x8] sm:$0xff] %v415
        %432 = vst [vmem:[%s173 + $0x10] sm:$0xff] %v416
        %433 = vst [vmem:[%s173 + $0x18] sm:$0xff] %v417
        %434 = vst [vmem:[%s173 + $0x20] sm:$0xff] %v418
        %435 = vst [vmem:[%s173 + $0x28] sm:$0xff] %v419
        %436 = vst [vmem:[%s173 + $0x30] sm:$0xff] %v420
        %437 = vst [vmem:[%s173 + $0x38] sm:$0xff] %v421
        %438 = vst [vmem:[%s173 + $0x40] sm:$0xff] %v422
        %439 = vst [vmem:[%s173 + $0x48] sm:$0xff] %v423
        %440 = vst [vmem:[%s173 + $0x50] sm:$0xff] %v424
        %441 = vst [vmem:[%s173 + $0x58] sm:$0xff] %v425
        %442 = vst [vmem:[%s173 + $0x60] sm:$0xff] %v426
        %443 = vst [vmem:[%s173 + $0x68] sm:$0xff] %v427
        %444 = vst [vmem:[%s173 + $0x70] sm:$0xff] %v428
        %445 = vst [vmem:[%s173 + $0x78] sm:$0xff] %v429
        %s446 = sand.u32 %s75, 1
        %s447 = scalar_lea.sflag [#allocation4], %s446
        %s448 = sand.u32 %s75, 1
        %s449 = smul.addr %s448, 128
        %s450 = scalar_lea.vmem [#allocation7], %s449
        // Predicated region
        $region37: #{tpu_custom_call.1} parent=27 // pred_check
          %p451 = pneg %p85
        $region38: #{tpu_custom_call.1} parent=27 // pred_check_branch
          %453 = sbr.rel (%p451) target = $region40
        $region39: #{tpu_custom_call.1} parent=27 // pred_region
          %s455 = ssub.s32 2048, 2048
          %456 = vsyncadd %s447, %s455
          %s457 = smul.addr %s20, 16
          %s458 = smul.addr %s457, 128
          %s459 = scalar_lea.hbm %s2, %s458
          %s460 = sshll.u32 %s450, 4
          %s461 = int_to_ptr.vmem [resolvable:$true] %s460
          %466 = dma.vmem_to_hbm [thread:$0]  %s461, 2048, %s459, %s447, 256, 256, 16
        $region40: #{tpu_custom_call.1} parent=27 // pred_fallthru
          _
      $region28: #{tpu_custom_call.1} parent=5 // pred_fallthru
        _
      %p467 = scmp.le.s32.totalorder 2, %s15
      // Predicated region
      $region41: #{tpu_custom_call.1} parent=5 // pred_check
        %p468 = pneg %p467
      $region42: #{tpu_custom_call.1} parent=5 // pred_check_branch
        %470 = sbr.rel (%p468) target = $region44
      $region43: #{tpu_custom_call.1} parent=5 // pred_region
        %s471 = ssub.s32 %s15, 2
        // Predicated region
        $region45: #{tpu_custom_call.1} parent=43 // pred_check
          %p472 = pneg %p91
        $region46: #{tpu_custom_call.1} parent=43 // pred_check_branch
          %474 = sbr.rel (%p472) target = $region48
        $region47: #{tpu_custom_call.1} parent=43 // pred_region
          %s475 = sand.u32 %s76, 1
          %s476 = scalar_lea.sflag [#allocation4], %s475
          %s477 = sand.u32 %s76, 1
          %s478 = smul.addr %s477, 128
          %s479 = scalar_lea.vmem [#allocation7], %s478
          %480 = dma.done %s476, 2048
        $region48: #{tpu_custom_call.1} parent=43 // pred_fallthru
          _
      $region44: #{tpu_custom_call.1} parent=5 // pred_fallthru
        _
    $region6: #{tpu_custom_call.1} parent=1 // loop_footer
      %s19 = sadd.s32 1, %s15
    $region7: #{tpu_custom_call.1} parent=1 // loop_footer_branch
      %14 = sbr.rel target = $region3
    $region8: #{tpu_custom_call.1} parent=1 // loop_exit
      _
    %481 = vsyncpa [#allocation3], 1
    %s482 = scalar_lea.sflag [#allocation3], 1
    %483 = vsyncpa %s482, 1
    %484 = vsyncpa [#allocation4], 1
    %s485 = scalar_lea.sflag [#allocation4], 1
    %486 = vsyncpa %s485, 1
    %487 = vsyncpa [#allocation5], 1
    %s488 = scalar_lea.sflag [#allocation5], 1
    %489 = vsyncpa %s488, 1

</llo_original>
